<compile_context>
chip_gen: v7x
topology: tpu7x:2x2x1
jax: 0.10.0
libtpu: 0.0.40
codegen_flags: <defaults>
</compile_context>

<pallas_src>
import functools

import jax
import jax.numpy as jnp
from jax.experimental import pallas as pl
from jax.experimental.pallas import tpu as pltpu


def _round_up(n, m):
    return (n + m - 1) // m * m


def _ffn_kernel(x_ref, w1_ref, b1_ref, w2_ref, params_ref, o_ref, acc_ref):
    # One (row tile i, feed-forward chunk k) grid step.
    #   x_ref:      (tm, D)   input rows (block constant across k)
    #   w1_ref:     (D, tf)   linear1 weight chunk, bf16
    #   b1_ref:     (1, tf)   linear1 bias chunk, f32
    #   w2_ref:     (tf, D)   linear2 weight chunk, bf16
    #   params_ref: (3, D)    [b2; gamma; beta], f32, grid-invariant
    #   o_ref:      (tm, D)   output rows (written at last k)
    #   acc_ref:    (tm, D)   f32 partial-sum accumulator (scratch)
    k = pl.program_id(1)

    @pl.when(k == 0)
    def _():
        acc_ref[...] = jnp.zeros_like(acc_ref)

    x = x_ref[...]

    # linear1 chunk + ReLU (dropout p=0.0 -> identity); bf16 MXU, f32 accumulate.
    h = jnp.dot(x.astype(w1_ref.dtype), w1_ref[...],
                preferred_element_type=jnp.float32)
    h = jnp.maximum(h + b1_ref[...], 0.0)

    # linear2 chunk; accumulate the partial (tm, D) result in f32.
    acc_ref[...] += jnp.dot(h.astype(w2_ref.dtype), w2_ref[...],
                            preferred_element_type=jnp.float32)

    @pl.when(k == pl.num_programs(1) - 1)
    def _():
        b2 = params_ref[0:1, :]
        gamma = params_ref[1:2, :]
        beta = params_ref[2:3, :]
        # residual (f32)
        r = x.astype(jnp.float32) + acc_ref[...] + b2
        # LayerNorm over d_model (biased variance, eps=1e-5, like torch)
        mean = jnp.mean(r, axis=-1, keepdims=True)
        c = r - mean
        var = jnp.mean(c * c, axis=-1, keepdims=True)
        inv = jax.lax.rsqrt(var + 1e-5)
        o_ref[...] = (c * inv * gamma + beta).astype(o_ref.dtype)


def _spec(shape, index_map, buffer_count=None):
    """BlockSpec helper; request explicit buffer depth when supported."""
    if buffer_count is None:
        return pl.BlockSpec(shape, index_map)
    try:
        return pl.BlockSpec(shape, index_map,
                            pipeline_mode=pl.Buffered(buffer_count))
    except Exception:  # older API without pipeline_mode / Buffered
        return pl.BlockSpec(shape, index_map)


@functools.partial(jax.jit, static_argnames=("tm", "tf_cap", "weight_dtype"))
def ffn_layer(tgt, w1, b1, w2, b2, gamma, beta, *, tm=512, tf_cap=2048,
              weight_dtype=jnp.bfloat16):
    """Fused FFNLayer forward.

    tgt: (S, B, D). w1: (D, F), b1: (F,), w2: (F, D), b2: (D,),
    gamma/beta: (D,). Returns (S, B, D).
    """
    S, B, D = tgt.shape
    F = w1.shape[1]
    N = S * B

    x_item = jnp.dtype(tgt.dtype).itemsize
    w_item = jnp.dtype(weight_dtype).itemsize

    # ---- feed-forward chunking ----
    # 256-lane multiples keep the v6e/v7x 256x256 MXU full on the second
    # matmul's contraction; zero padding is exact (padded h columns are 0).
    lane_mult = 256
    tf = min(_round_up(F, lane_mult), _round_up(max(tf_cap, lane_mult), lane_mult))

    # ---- row tiling: no ">= 2 steps" shrink (v5e/v6e are single-TC) ----
    tm_eff = _round_up(min(tm, max(N, 8)), 8)

    # ---- per-TensorCore VMEM budget (v7x: 64 MiB, v5e/v6e: 128 MiB) ----
    try:
        vmem_cap = pltpu.get_tpu_info().vmem_capacity_bytes
    except Exception:
        vmem_cap = 64 << 20  # conservative (v7x)
    hard_cap = max(vmem_cap - (8 << 20), 24 << 20)

    def vmem_est(tm_e, tf_e, num_k):
        bufs_w = 1 if num_k == 1 else 2        # grid-invariant -> single buffer
        return (bufs_w * 2 * D * tf_e * w_item     # w1 + w2 chunks
                + bufs_w * tf_e * 4                # b1 chunk
                + 3 * D * 4                        # b2/gamma/beta (single buf)
                + 4 * tm_e * D * x_item            # x + out tiles, double-buffered
                + tm_e * D * 4                     # f32 accumulator scratch
                + tm_e * tf_e * (4 + w_item)       # h f32 + bf16 copy for matmul2
                + 4 * tm_e * D * 4)                # residual / LayerNorm temps

    num_k = _round_up(F, tf) // tf
    while vmem_est(tm_eff, tf, num_k) > hard_cap and tf > lane_mult:
        tf = max(lane_mult, (tf // 2) // lane_mult * lane_mult)
        num_k = _round_up(F, tf) // tf
    while vmem_est(tm_eff, tf, num_k) > hard_cap and tm_eff > 64:
        tm_eff = max(64, _round_up(tm_eff // 2, 8))

    Fp = tf * num_k
    Np = _round_up(N, tm_eff)

    # ---- operand prep (padding is exact: padded weight cols/rows are zero) ----
    x2d = tgt.reshape(N, D)
    if Np != N:
        x2d = jnp.pad(x2d, ((0, Np - N), (0, 0)))

    w1p = w1.astype(weight_dtype)
    w2p = w2.astype(weight_dtype)
    b1p = b1.astype(jnp.float32)
    if Fp != F:
        w1p = jnp.pad(w1p, ((0, 0), (0, Fp - F)))
        w2p = jnp.pad(w2p, ((0, Fp - F), (0, 0)))
        b1p = jnp.pad(b1p, ((0, Fp - F),))
    b1_2d = b1p.reshape(1, Fp)

    # b2 / gamma / beta folded into a single (3, D) f32 operand.
    params = jnp.stack([b2.astype(jnp.float32),
                        gamma.astype(jnp.float32),
                        beta.astype(jnp.float32)], axis=0)

    grid = (Np // tm_eff, num_k)

    est = vmem_est(tm_eff, tf, num_k)
    vmem_limit = int(min(max(est + (8 << 20), 32 << 20), hard_cap))

    cost = pl.CostEstimate(
        flops=4 * Np * D * Fp,                      # two matmuls
        transcendentals=Np,                         # one rsqrt per row
        bytes_accessed=(2 * Np * D * x_item
                        + (grid[0] if num_k > 1 else 1) * 2 * D * Fp * w_item
                        + (Fp + 3 * D) * 4),
    )

    # Single-buffer weights/b1 only when they are grid-invariant (num_k == 1).
    w_bufs = 1 if num_k == 1 else None

    out = pl.pallas_call(
        _ffn_kernel,
        out_shape=jax.ShapeDtypeStruct((Np, D), tgt.dtype),
        grid_spec=pltpu.PrefetchScalarGridSpec(
            num_scalar_prefetch=0,
            grid=grid,
            in_specs=[
                _spec((tm_eff, D), lambda i, k: (i, 0)),             # x rows
                _spec((D, tf), lambda i, k: (0, k), w_bufs),         # w1 chunk
                _spec((1, tf), lambda i, k: (0, k), w_bufs),         # b1 chunk
                _spec((tf, D), lambda i, k: (k, 0), w_bufs),         # w2 chunk
                _spec((3, D), lambda i, k: (0, 0), 1),               # b2/gamma/beta
            ],
            out_specs=_spec((tm_eff, D), lambda i, k: (i, 0)),
            scratch_shapes=[pltpu.VMEM((tm_eff, D), jnp.float32)],
        ),
        compiler_params=pltpu.CompilerParams(
            dimension_semantics=("parallel", "arbitrary"),
            vmem_limit_bytes=vmem_limit,
        ),
        cost_estimate=cost,
    )(x2d, w1p, b1_2d, w2p, params)

    return out[:N].reshape(S, B, D)


def _xavier_uniform(key, fan_in, fan_out, shape, dtype=jnp.float32):
    bound = (6.0 / (fan_in + fan_out)) ** 0.5
    return jax.random.uniform(key, shape, dtype=dtype, minval=-bound, maxval=bound)


def _reference(tgt, w1, b1, w2, b2, gamma, beta, weight_dtype=jnp.bfloat16):
    # Mirrors the kernel's bf16 matmul inputs (f32 accumulation) so the
    # comparison isolates accumulation-order differences only.
    f32 = jnp.float32
    xq = tgt.astype(weight_dtype).astype(f32)
    w1q = w1.astype(weight_dtype).astype(f32)
    w2q = w2.astype(weight_dtype).astype(f32)
    h = jnp.maximum(xq @ w1q + b1, 0.0)
    tgt2 = h.astype(weight_dtype).astype(f32) @ w2q + b2
    r = tgt.astype(f32) + tgt2
    mean = jnp.mean(r, axis=-1, keepdims=True)
    var = jnp.mean((r - mean) ** 2, axis=-1, keepdims=True)
    return (r - mean) * jax.lax.rsqrt(var + 1e-5) * gamma + beta


def _make_params(key, D, F):
    k_x, k_w1, k_b1, k_w2, k_b2 = jax.random.split(key, 5)
    w1 = _xavier_uniform(k_w1, D, F, (D, F))          # linear1.weight.T
    b1 = jax.random.uniform(k_b1, (F,), minval=-1.0 / D ** 0.5, maxval=1.0 / D ** 0.5)
    w2 = _xavier_uniform(k_w2, F, D, (F, D))          # linear2.weight.T
    b2 = jax.random.uniform(k_b2, (D,), minval=-1.0 / F ** 0.5, maxval=1.0 / F ** 0.5)
    gamma = jnp.ones((D,), jnp.float32)
    beta = jnp.zeros((D,), jnp.float32)
    return k_x, w1, b1, w2, b2, gamma, beta


if __name__ == "__main__":
    key = jax.random.PRNGKey(0)
    key_a, key_b = jax.random.split(key)

    # --- test 1: small shapes (seq=8, batch=2, d_model=32, dim_feedforward=64) ---
    S, B, D, F = 8, 2, 32, 64
    k_x, w1, b1, w2, b2, gamma, beta = _make_params(key_a, D, F)
    tgt = jax.random.normal(k_x, (S, B, D), dtype=jnp.float32)

    out = jax.block_until_ready(ffn_layer(tgt, w1, b1, w2, b2, gamma, beta))
    ref = _reference(tgt, w1, b1, w2, b2, gamma, beta)
    assert out.shape == (S, B, D)
    assert jnp.allclose(out, ref, atol=5e-3, rtol=5e-3), (
        float(jnp.max(jnp.abs(out - ref))))

    # --- test 2: exercises the F-axis accumulation path (F=512, tf_cap=256 -> 2 chunks) ---
    S2, B2, D2, F2 = 8, 2, 32, 512
    k_x2, w1b, b1b, w2b, b2b, gammab, betab = _make_params(key_b, D2, F2)
    tgt2 = jax.random.normal(k_x2, (S2, B2, D2), dtype=jnp.float32)

    out2 = jax.block_until_ready(
        ffn_layer(tgt2, w1b, b1b, w2b, b2b, gammab, betab, tf_cap=256))
    ref2 = _reference(tgt2, w1b, b1b, w2b, b2b, gammab, betab)
    assert out2.shape == (S2, B2, D2)
    assert jnp.allclose(out2, ref2, atol=5e-3, rtol=5e-3), (
        float(jnp.max(jnp.abs(out2 - ref2))))

    print("KERNEL_OK")
</pallas_src>

<mosaic_0001>
module attributes {stable_mosaic.version = 11 : i64} {
  func.func @_ffn_kernel(%arg0: i32, %arg1: i32, %arg2: memref<16x32xf32, #tpu.memory_space<vmem>>, %arg3: memref<32x256xbf16, #tpu.memory_space<vmem>>, %arg4: memref<1x256xf32, #tpu.memory_space<vmem>>, %arg5: memref<256x32xbf16, #tpu.memory_space<vmem>>, %arg6: memref<3x32xf32, #tpu.memory_space<vmem>>, %arg7: memref<16x32xf32, #tpu.memory_space<vmem>>, %arg8: memref<16x32xf32, #tpu.memory_space<vmem>>) attributes {dimension_semantics = [#tpu.dimension_semantics<parallel>, #tpu.dimension_semantics<arbitrary>], iteration_bounds = array<i64: 1, 1>, scalar_prefetch = 0 : i64, scratch_operands = 1 : i64, tpu.core_type = #tpu.core_type<tc>, window_params = [{transform_indices = @transform_0, window_bounds = array<i64: 16, 32>}, {pipeline_mode = #tpu.pipeline_mode<synchronous>, transform_indices = @transform_1, window_bounds = array<i64: 32, 256>}, {pipeline_mode = #tpu.pipeline_mode<synchronous>, transform_indices = @transform_2, window_bounds = array<i64: 1, 256>}, {pipeline_mode = #tpu.pipeline_mode<synchronous>, transform_indices = @transform_3, window_bounds = array<i64: 256, 32>}, {pipeline_mode = #tpu.pipeline_mode<synchronous>, transform_indices = @transform_4, window_bounds = array<i64: 3, 32>}, {transform_indices = @transform_5, window_bounds = array<i64: 16, 32>}]} {
    %c0_i32 = arith.constant 0 : i32
    %0 = arith.cmpi eq, %arg1, %c0_i32 : i32
    %1 = arith.extui %0 : i1 to i32
    %c0_i32_0 = arith.constant 0 : i32
    %2 = arith.cmpi ne, %1, %c0_i32_0 : i32
    scf.if %2 {
      %cst_16 = arith.constant 0.000000e+00 : f32
      %21 = vector.broadcast %cst_16 : f32 to vector<16x32xf32>
      %c0_17 = arith.constant 0 : index
      %c0_18 = arith.constant 0 : index
      %22 = vector.load %arg8[%c0_17, %c0_18] : memref<16x32xf32, #tpu.memory_space<vmem>>, vector<16x32xf32>
      tpu.vector_store %arg8[%c0_17, %c0_18], %21 {strides = array<i32>} : memref<16x32xf32, #tpu.memory_space<vmem>>, vector<16x32xf32>,
    } else {
    }
    %c0 = arith.constant 0 : index
    %c0_1 = arith.constant 0 : index
    %3 = vector.load %arg2[%c0, %c0_1] : memref<16x32xf32, #tpu.memory_space<vmem>>, vector<16x32xf32>
    %4 = arith.truncf %3 : vector<16x32xf32> to vector<16x32xbf16>
    %c0_2 = arith.constant 0 : index
    %c0_3 = arith.constant 0 : index
    %5 = vector.load %arg3[%c0_2, %c0_3] : memref<32x256xbf16, #tpu.memory_space<vmem>>, vector<32x256xbf16>
    %cst = arith.constant dense<0.000000e+00> : vector<16x256xf32>
    %6 = tpu.matmul %4, %5, %cst {dimension_numbers = #tpu.dot_dimension_numbers<[1], [0], [0], [1], [0, 0, 1, 1], [], []>} : vector<16x32xbf16>, vector<32x256xbf16>, vector<16x256xf32> -> vector<16x256xf32>
    %c0_4 = arith.constant 0 : index
    %c0_5 = arith.constant 0 : index
    %7 = vector.load %arg4[%c0_4, %c0_5] : memref<1x256xf32, #tpu.memory_space<vmem>>, vector<1x256xf32>
    %8 = vector.broadcast %7 : vector<1x256xf32> to vector<16x256xf32>
    %9 = arith.addf %6, %8 : vector<16x256xf32>
    %cst_6 = arith.constant 0.000000e+00 : f32
    %10 = vector.broadcast %cst_6 : f32 to vector<16x256xf32>
    %11 = arith.maximumf %9, %10 : vector<16x256xf32>
    %c0_7 = arith.constant 0 : index
    %c0_8 = arith.constant 0 : index
    %12 = vector.load %arg8[%c0_7, %c0_8] : memref<16x32xf32, #tpu.memory_space<vmem>>, vector<16x32xf32>
    %13 = arith.truncf %11 : vector<16x256xf32> to vector<16x256xbf16>
    %c0_9 = arith.constant 0 : index
    %c0_10 = arith.constant 0 : index
    %14 = vector.load %arg5[%c0_9, %c0_10] : memref<256x32xbf16, #tpu.memory_space<vmem>>, vector<256x32xbf16>
    %cst_11 = arith.constant dense<0.000000e+00> : vector<16x32xf32>
    %15 = tpu.matmul %13, %14, %cst_11 {dimension_numbers = #tpu.dot_dimension_numbers<[1], [0], [0], [1], [0, 0, 1, 1], [], []>} : vector<16x256xbf16>, vector<256x32xbf16>, vector<16x32xf32> -> vector<16x32xf32>
    %16 = arith.addf %12, %15 : vector<16x32xf32>
    %c0_12 = arith.constant 0 : index
    %c0_13 = arith.constant 0 : index
    %17 = vector.load %arg8[%c0_12, %c0_13] : memref<16x32xf32, #tpu.memory_space<vmem>>, vector<16x32xf32>
    tpu.vector_store %arg8[%c0_12, %c0_13], %16 {strides = array<i32>} : memref<16x32xf32, #tpu.memory_space<vmem>>, vector<16x32xf32>,
    %c0_i32_14 = arith.constant 0 : i32
    %18 = arith.cmpi eq, %arg1, %c0_i32_14 : i32
    %19 = arith.extui %18 : i1 to i32
    %c0_i32_15 = arith.constant 0 : i32
    %20 = arith.cmpi ne, %19, %c0_i32_15 : i32
    scf.if %20 {
      %c0_16 = arith.constant 0 : index
      %c0_17 = arith.constant 0 : index
      %21 = vector.load %arg6[%c0_16, %c0_17] : memref<3x32xf32, #tpu.memory_space<vmem>>, vector<1x32xf32>
      %c1 = arith.constant 1 : index
      %c0_18 = arith.constant 0 : index
      %22 = vector.load %arg6[%c1, %c0_18] : memref<3x32xf32, #tpu.memory_space<vmem>>, vector<1x32xf32>
      %c2 = arith.constant 2 : index
      %c0_19 = arith.constant 0 : index
      %23 = vector.load %arg6[%c2, %c0_19] : memref<3x32xf32, #tpu.memory_space<vmem>>, vector<1x32xf32>
      %c0_20 = arith.constant 0 : index
      %c0_21 = arith.constant 0 : index
      %24 = vector.load %arg8[%c0_20, %c0_21] : memref<16x32xf32, #tpu.memory_space<vmem>>, vector<16x32xf32>
      %25 = arith.addf %3, %24 : vector<16x32xf32>
      %26 = vector.broadcast %21 : vector<1x32xf32> to vector<16x32xf32>
      %27 = arith.addf %25, %26 : vector<16x32xf32>
      %cst_22 = arith.constant dense<0.000000e+00> : vector<16xf32>
      %28 = vector.multi_reduction <add>, %27, %cst_22 [1] : vector<16x32xf32> to vector<16xf32>
      %29 = vector.shape_cast %28 : vector<16xf32> to vector<16x1xf32>
      %cst_23 = arith.constant 3.200000e+01 : f32
      %30 = vector.broadcast %cst_23 : f32 to vector<16x1xf32>
      %31 = arith.divf %29, %30 : vector<16x1xf32>
      %32 = vector.broadcast %31 : vector<16x1xf32> to vector<16x32xf32>
      %33 = arith.subf %27, %32 : vector<16x32xf32>
      %34 = arith.mulf %33, %33 : vector<16x32xf32>
      %cst_24 = arith.constant dense<0.000000e+00> : vector<16xf32>
      %35 = vector.multi_reduction <add>, %34, %cst_24 [1] : vector<16x32xf32> to vector<16xf32>
      %36 = vector.shape_cast %35 : vector<16xf32> to vector<16x1xf32>
      %cst_25 = arith.constant 3.200000e+01 : f32
      %37 = vector.broadcast %cst_25 : f32 to vector<16x1xf32>
      %38 = arith.divf %36, %37 : vector<16x1xf32>
      %cst_26 = arith.constant 9.99999974E-6 : f32
      %39 = vector.broadcast %cst_26 : f32 to vector<16x1xf32>
      %40 = arith.addf %38, %39 : vector<16x1xf32>
      %41 = math.rsqrt %40 : vector<16x1xf32>
      %42 = vector.broadcast %41 : vector<16x1xf32> to vector<16x32xf32>
      %43 = arith.mulf %33, %42 : vector<16x32xf32>
      %44 = vector.broadcast %22 : vector<1x32xf32> to vector<16x32xf32>
      %45 = arith.mulf %43, %44 : vector<16x32xf32>
      %46 = vector.broadcast %23 : vector<1x32xf32> to vector<16x32xf32>
      %47 = arith.addf %45, %46 : vector<16x32xf32>
      %c0_27 = arith.constant 0 : index
      %c0_28 = arith.constant 0 : index
      %48 = vector.load %arg7[%c0_27, %c0_28] : memref<16x32xf32, #tpu.memory_space<vmem>>, vector<16x32xf32>
      tpu.vector_store %arg7[%c0_27, %c0_28], %47 {strides = array<i32>} : memref<16x32xf32, #tpu.memory_space<vmem>>, vector<16x32xf32>,
    } else {
    }
    return
  }
  func.func @transform_0(%arg0: i32, %arg1: i32) -> (i32, i32) {
    %c0_i32 = arith.constant 0 : i32
    %c0_i32_0 = arith.constant 0 : i32
    return %arg0, %c0_i32 : i32, i32
  }
  func.func @transform_1(%arg0: i32, %arg1: i32) -> (i32, i32) {
    %c0_i32 = arith.constant 0 : i32
    %c0_i32_0 = arith.constant 0 : i32
    return %c0_i32, %arg1 : i32, i32
  }
  func.func @transform_2(%arg0: i32, %arg1: i32) -> (i32, i32) {
    %c0_i32 = arith.constant 0 : i32
    %c0_i32_0 = arith.constant 0 : i32
    return %c0_i32, %arg1 : i32, i32
  }
  func.func @transform_3(%arg0: i32, %arg1: i32) -> (i32, i32) {
    %c0_i32 = arith.constant 0 : i32
    %c0_i32_0 = arith.constant 0 : i32
    return %arg1, %c0_i32 : i32, i32
  }
  func.func @transform_4(%arg0: i32, %arg1: i32) -> (i32, i32) {
    %c0_i32 = arith.constant 0 : i32
    %c0_i32_0 = arith.constant 0 : i32
    %c0_i32_1 = arith.constant 0 : i32
    return %c0_i32, %c0_i32_0 : i32, i32
  }
  func.func @transform_5(%arg0: i32, %arg1: i32) -> (i32, i32) {
    %c0_i32 = arith.constant 0 : i32
    %c0_i32_0 = arith.constant 0 : i32
    return %arg0, %c0_i32 : i32, i32
  }
}

</mosaic_0001>

<llo_original>
// kernel: ffn_layer.1
$region0: #{ffn_layer.1}
  #allocation0 [shape = 'u32[]', space=smem, size = 0x4, offset = 0x4, fixed_abs, tag = 'smem constant byte address 0x4 - core index']
  #allocation1 [shape = 'u32[144,128]{1,0:T(1,128)}', space=vmem, size = 0x12000, scoped, tag = 'internal scratch']
  #allocation2 [shape = 'f32[16,32]{1,0:T(8,128)}', space=vmem, size = 0x2000, scoped, tag = 'scratch operand']
  %s0 = inlined_call_operand.vmem [shape: f32[16,32], index: 0, kind: input, shape index: {}]
  %s1 = inlined_call_operand.vmem [shape: bf16[32,256], index: 1, kind: input, shape index: {}]
  %s2 = inlined_call_operand.vmem [shape: f32[1,256], index: 2, kind: input, shape index: {}]
  %s3 = inlined_call_operand.vmem [shape: bf16[256,32], index: 3, kind: input, shape index: {}]
  %s4 = inlined_call_operand.vmem [shape: f32[3,32], index: 4, kind: input, shape index: {}]
  %s5 = inlined_call_operand.hbm [shape: f32[16,32], index: 5, kind: output, shape index: {}]
  %s6 = sld [smem:[#allocation0]]
  $region38: #{ffn_layer.1} parent=0
    _
  %s8 = ssub.s32 1, %s6
  %s9 = scalar_select 0, %s8, %s6
  $region1: #{ffn_layer.1} parent=0
    #allocation3 [shape = 'u8[8192]{0}', space=vmem, size = 0x2000, scoped, tag = 'output window, operand 0, single buffered']
    #allocation4 [shape = 's32[1]{0}', space=sflag, size = 0x4, scoped, tag = 'scoped memory for ffn_layer.1']
    %10 = vsyncpa [#allocation4], 0
    // Predicated region
    $region2: #{ffn_layer.1} parent=1 // pred_check
      _
    $region3: #{ffn_layer.1} parent=1 // pred_check_branch
      %12 = sbr.rel (0) target = $region5
    $region4: #{ffn_layer.1} parent=1 // pred_region
      _
    $region5: #{ffn_layer.1} parent=1 // pred_fallthru
      _
    // Predicated region
    $region6: #{ffn_layer.1} parent=1 // pred_check
      _
    $region7: #{ffn_layer.1} parent=1 // pred_check_branch
      %14 = sbr.rel (0) target = $region9
    $region8: #{ffn_layer.1} parent=1 // pred_region
      _
    $region9: #{ffn_layer.1} parent=1 // pred_fallthru
      _
    // Predicated region
    $region10: #{ffn_layer.1} parent=1 // pred_check
      _
    $region11: #{ffn_layer.1} parent=1 // pred_check_branch
      %16 = sbr.rel (0) target = $region13
    $region12: #{ffn_layer.1} parent=1 // pred_region
      _
    $region13: #{ffn_layer.1} parent=1 // pred_fallthru
      _
    // Predicated region
    $region14: #{ffn_layer.1} parent=1 // pred_check
      _
    $region15: #{ffn_layer.1} parent=1 // pred_check_branch
      %18 = sbr.rel (0) target = $region17
    $region16: #{ffn_layer.1} parent=1 // pred_region
      _
    $region17: #{ffn_layer.1} parent=1 // pred_fallthru
      _
    // Predicated region
    $region18: #{ffn_layer.1} parent=1 // pred_check
      _
    $region19: #{ffn_layer.1} parent=1 // pred_check_branch
      %20 = sbr.rel (0) target = $region21
    $region20: #{ffn_layer.1} parent=1 // pred_region
      _
    $region21: #{ffn_layer.1} parent=1 // pred_fallthru
      _
    %p22 = scmp.eq.s32.totalorder 0, 0
    // Predicated region
    $region22: #{ffn_layer.1} parent=1 // pred_check
      %p23 = pneg %p22
    $region23: #{ffn_layer.1} parent=1 // pred_check_branch
      %25 = sbr.rel (%p23) target = $region25
    $region24: #{ffn_layer.1} parent=1 // pred_region
      %vm26 = vcmask 261120
      %27 = vst.msk [vmem:[#allocation2] sm:$0xff] %vm26, 0.0
      %28 = vst.msk [vmem:[#allocation2 + $0x8] sm:$0xff] %vm26, 0.0
    $region25: #{ffn_layer.1} parent=1 // pred_fallthru
      _
    %v29 = vld [vmem:[%s0] sm:$0xff]
    %v30 = vld [vmem:[%s0 + $0x8] sm:$0xff]
    %v31 = vpack.c.bf16 %v30, %v29
    %v32 = vld [vmem:[%s1] sm:$0xff]
    %v33 = vld [vmem:[%s1 + $0x8] sm:$0xff]
    %v34 = vld [vmem:[%s1 + $0x10] sm:$0xff]
    %v35 = vld [vmem:[%s1 + $0x18] sm:$0xff]
    %v36 = vld [vmem:[%s2] sm:$0x3]
    %v38 = vlaneseq
    %v39 = vshrl.u32 %v38, 7
    %v40 = vsub.s32 0, %v39
    %v41 = vrot.slane %v36, %v40
    %v42 = vlaneseq
    %v43 = vshrl.u32 %v42, 7
    %v44 = vsub.s32 1, %v43
    %v45 = vrot.slane %v36, %v44
    %v52 = vunpack.c.l.b16 %v32
    %v53 = vunpack.c.h.b16 %v32
    %v54 = vunpack.c.l.b16 %v33
    %v55 = vunpack.c.h.b16 %v33
    %v56 = vunpack.c.l.b16 %v34
    %v57 = vunpack.c.h.b16 %v34
    %v58 = vunpack.c.l.b16 %v35
    %v59 = vunpack.c.h.b16 %v35
    %v60 = vpack.c.b16 %v54, %v52
    %v61 = vpack.c.b16 %v55, %v53
    %v62 = vpack.c.b16 %v58, %v56
    %v63 = vpack.c.b16 %v59, %v57
    %vm68 = vcmask 261120
    %v70 = vsel %vm68, %v31, 0
    %72 = vmatprep.subr.bf16.mxu0 %v61
    %73 = vmatpush1.bf16.msra.mxu0 %v60
    %74 = vmatprep.subr.bf16.mxu0 %v63
    %75 = vmatpush1.bf16.msra.mxu0 %v62
    %76 = vmatprep.subr.bf16.mxu0 0
    %77 = vmatpush1.bf16.msra.mxu0 0
    %78 = vmatprep.subr.bf16.mxu0 0
    %79 = vmatpush1.bf16.msra.mxu0 0
    %80 = vmatprep.subr.bf16.mxu0 0
    %81 = vmatpush1.bf16.msra.mxu0 0
    %82 = vmatprep.subr.bf16.mxu0 0
    %83 = vmatpush1.bf16.msra.mxu0 0
    %84 = vmatprep.subr.bf16.mxu0 0
    %85 = vmatpush1.bf16.msra.mxu0 0
    %86 = vmatprep.subr.bf16.mxu0 0
    %87 = vmatpush1.bf16.msra.mxu0 0
    %88 = vmatprep.subr.bf16.mxu0 0
    %89 = vmatpush1.bf16.msra.mxu0 0
    %90 = vmatprep.subr.bf16.mxu0 0
    %91 = vmatpush1.bf16.msra.mxu0 0
    %92 = vmatprep.subr.bf16.mxu0 0
    %93 = vmatpush1.bf16.msra.mxu0 0
    %94 = vmatprep.subr.bf16.mxu0 0
    %95 = vmatpush1.bf16.msra.mxu0 0
    %96 = vmatprep.subr.bf16.mxu0 0
    %97 = vmatpush1.bf16.msra.mxu0 0
    %98 = vmatprep.subr.bf16.mxu0 0
    %99 = vmatpush1.bf16.msra.mxu0 0
    %100 = vmatprep.subr.bf16.mxu0 0
    %101 = vmatpush1.bf16.msra.mxu0 0
    %102 = vmatprep.subr.bf16.mxu0 0
    %103 = vmatpush1.bf16.msra.mxu0 0
    %104 = vmatprep.mubr.bf16.mxu0 0
    %105 = vmatmul.mubr.bf16.gmra.mrb[0].mxu0 %v70
    %v106 = vpop.f32.mrb[0].mxu0
    %v107 = vadd.f32 %v41, %v106
    %v108 = vpop.f32.mrb[0].mxu0
    %v109 = vadd.f32 %v45, %v108
    %v110 = vpop.f32.mrb[0].mxu0
    %v111 = vadd.f32 %v41, %v110
    %v112 = vpop.f32.mrb[0].mxu0
    %v113 = vadd.f32 %v45, %v112
    %114 = vdwg.mxu0
    %v115 = vmax.f32 %v107, 0.0
    %v116 = vmax.f32 %v109, 0.0
    %v117 = vmax.f32 %v111, 0.0
    %v118 = vmax.f32 %v113, 0.0
    %v119 = vld [vmem:[#allocation2] sm:$0xff]
    %v120 = vld [vmem:[#allocation2 + $0x8] sm:$0xff]
    %v121 = vpack.c.bf16 %v117, %v115
    %v122 = vpack.c.bf16 %v118, %v116
    %v123 = vld [vmem:[%s3] sm:$0xf]
    %v124 = vld [vmem:[%s3 + $0x4] sm:$0xf]
    %v125 = vld [vmem:[%s3 + $0x8] sm:$0xf]
    %v126 = vld [vmem:[%s3 + $0xc] sm:$0xf]
    %v127 = vld [vmem:[%s3 + $0x10] sm:$0xf]
    %v128 = vld [vmem:[%s3 + $0x14] sm:$0xf]
    %v129 = vld [vmem:[%s3 + $0x18] sm:$0xf]
    %v130 = vld [vmem:[%s3 + $0x1c] sm:$0xf]
    %v131 = vld [vmem:[%s3 + $0x20] sm:$0xf]
    %v132 = vld [vmem:[%s3 + $0x24] sm:$0xf]
    %v133 = vld [vmem:[%s3 + $0x28] sm:$0xf]
    %v134 = vld [vmem:[%s3 + $0x2c] sm:$0xf]
    %v135 = vld [vmem:[%s3 + $0x30] sm:$0xf]
    %v136 = vld [vmem:[%s3 + $0x34] sm:$0xf]
    %v137 = vld [vmem:[%s3 + $0x38] sm:$0xf]
    %v138 = vld [vmem:[%s3 + $0x3c] sm:$0xf]
    %v139 = vld [vmem:[%s3 + $0x40] sm:$0xf]
    %v140 = vld [vmem:[%s3 + $0x44] sm:$0xf]
    %v141 = vld [vmem:[%s3 + $0x48] sm:$0xf]
    %v142 = vld [vmem:[%s3 + $0x4c] sm:$0xf]
    %v143 = vld [vmem:[%s3 + $0x50] sm:$0xf]
    %v144 = vld [vmem:[%s3 + $0x54] sm:$0xf]
    %v145 = vld [vmem:[%s3 + $0x58] sm:$0xf]
    %v146 = vld [vmem:[%s3 + $0x5c] sm:$0xf]
    %v147 = vld [vmem:[%s3 + $0x60] sm:$0xf]
    %v148 = vld [vmem:[%s3 + $0x64] sm:$0xf]
    %v149 = vld [vmem:[%s3 + $0x68] sm:$0xf]
    %v150 = vld [vmem:[%s3 + $0x6c] sm:$0xf]
    %v151 = vld [vmem:[%s3 + $0x70] sm:$0xf]
    %v152 = vld [vmem:[%s3 + $0x74] sm:$0xf]
    %v153 = vld [vmem:[%s3 + $0x78] sm:$0xf]
    %v154 = vld [vmem:[%s3 + $0x7c] sm:$0xf]
    %v187 = vunpack.c.l.b16 %v123
    %v188 = vunpack.c.l.b16 %v124
    %v189 = vunpack.c.l.b16 %v125
    %v190 = vunpack.c.l.b16 %v126
    %v191 = vunpack.c.l.b16 %v127
    %v192 = vunpack.c.l.b16 %v128
    %v193 = vunpack.c.l.b16 %v129
    %v194 = vunpack.c.l.b16 %v130
    %v195 = vunpack.c.l.b16 %v131
    %v196 = vunpack.c.l.b16 %v132
    %v197 = vunpack.c.l.b16 %v133
    %v198 = vunpack.c.l.b16 %v134
    %v199 = vunpack.c.l.b16 %v135
    %v200 = vunpack.c.l.b16 %v136
    %v201 = vunpack.c.l.b16 %v137
    %v202 = vunpack.c.l.b16 %v138
    %v203 = vunpack.c.l.b16 %v139
    %v204 = vunpack.c.l.b16 %v140
    %v205 = vunpack.c.l.b16 %v141
    %v206 = vunpack.c.l.b16 %v142
    %v207 = vunpack.c.l.b16 %v143
    %v208 = vunpack.c.l.b16 %v144
    %v209 = vunpack.c.l.b16 %v145
    %v210 = vunpack.c.l.b16 %v146
    %v211 = vunpack.c.l.b16 %v147
    %v212 = vunpack.c.l.b16 %v148
    %v213 = vunpack.c.l.b16 %v149
    %v214 = vunpack.c.l.b16 %v150
    %v215 = vunpack.c.l.b16 %v151
    %v216 = vunpack.c.l.b16 %v152
    %v217 = vunpack.c.l.b16 %v153
    %v218 = vunpack.c.l.b16 %v154
    %v219 = vpack.c.b16 %v188, %v187
    %v220 = vpack.c.b16 %v190, %v189
    %v221 = vpack.c.b16 %v192, %v191
    %v222 = vpack.c.b16 %v194, %v193
    %v223 = vpack.c.b16 %v196, %v195
    %v224 = vpack.c.b16 %v198, %v197
    %v225 = vpack.c.b16 %v200, %v199
    %v226 = vpack.c.b16 %v202, %v201
    %v227 = vpack.c.b16 %v204, %v203
    %v228 = vpack.c.b16 %v206, %v205
    %v229 = vpack.c.b16 %v208, %v207
    %v230 = vpack.c.b16 %v210, %v209
    %v231 = vpack.c.b16 %v212, %v211
    %v232 = vpack.c.b16 %v214, %v213
    %v233 = vpack.c.b16 %v216, %v215
    %v234 = vpack.c.b16 %v218, %v217
    %251 = vmatprep.subr.bf16.mxu0 0
    %252 = vmatpush1.bf16.msra.mxu0 %v219
    %253 = vmatprep.subr.bf16.mxu0 0
    %254 = vmatpush1.bf16.msra.mxu0 %v220
    %255 = vmatprep.subr.bf16.mxu0 0
    %256 = vmatpush1.bf16.msra.mxu0 %v221
    %257 = vmatprep.subr.bf16.mxu0 0
    %258 = vmatpush1.bf16.msra.mxu0 %v222
    %259 = vmatprep.subr.bf16.mxu0 0
    %260 = vmatpush1.bf16.msra.mxu0 %v223
    %261 = vmatprep.subr.bf16.mxu0 0
    %262 = vmatpush1.bf16.msra.mxu0 %v224
    %263 = vmatprep.subr.bf16.mxu0 0
    %264 = vmatpush1.bf16.msra.mxu0 %v225
    %265 = vmatprep.subr.bf16.mxu0 0
    %266 = vmatpush1.bf16.msra.mxu0 %v226
    %267 = vmatprep.subr.bf16.mxu0 0
    %268 = vmatpush1.bf16.msra.mxu0 %v227
    %269 = vmatprep.subr.bf16.mxu0 0
    %270 = vmatpush1.bf16.msra.mxu0 %v228
    %271 = vmatprep.subr.bf16.mxu0 0
    %272 = vmatpush1.bf16.msra.mxu0 %v229
    %273 = vmatprep.subr.bf16.mxu0 0
    %274 = vmatpush1.bf16.msra.mxu0 %v230
    %275 = vmatprep.subr.bf16.mxu0 0
    %276 = vmatpush1.bf16.msra.mxu0 %v231
    %277 = vmatprep.subr.bf16.mxu0 0
    %278 = vmatpush1.bf16.msra.mxu0 %v232
    %279 = vmatprep.subr.bf16.mxu0 0
    %280 = vmatpush1.bf16.msra.mxu0 %v233
    %281 = vmatprep.subr.bf16.mxu0 0
    %282 = vmatpush1.bf16.msra.mxu0 %v234
    %283 = vmatprep.mubr.bf16.mxu0 %v122
    %284 = vmatmul.mubr.bf16.gmra.mrb[0].mxu0 %v121
    %v285 = vpop.f32.mrb[0].mxu0
    %v286 = vadd.f32 0.0, %v285
    %v287 = vpop.f32.mrb[0].mxu0
    %v288 = vpop.f32.mrb[0].mxu0
    %v289 = vadd.f32 0.0, %v288
    %v290 = vpop.f32.mrb[0].mxu0
    %291 = vdwg.mxu0
    %v292 = vadd.f32 %v119, %v286
    %v293 = vadd.f32 %v120, %v289
    %294 = vst.msk [vmem:[#allocation2] sm:$0xff] %vm68, %v292
    %295 = vst.msk [vmem:[#allocation2 + $0x8] sm:$0xff] %vm68, %v293
    // Predicated region
    $region26: #{ffn_layer.1} parent=1 // pred_check
      %p296 = pneg %p22
    $region27: #{ffn_layer.1} parent=1 // pred_check_branch
      %298 = sbr.rel (%p296) target = $region29
    $region28: #{ffn_layer.1} parent=1 // pred_region
      %v299 = vld [vmem:[%s4] sm:$0x1]
      %v300 = vld [vmem:[%s4 + $0x1] sm:$0x1]
      %v301 = vld [vmem:[%s4 + $0x2] sm:$0x1]
      %v302 = vld [vmem:[#allocation2] sm:$0xff]
      %v303 = vld [vmem:[#allocation2 + $0x8] sm:$0xff]
      %v304 = vadd.f32 %v29, %v302
      %v305 = vadd.f32 %v30, %v303
      %v306 = vlaneseq
      %v307 = vshrl.u32 %v306, 7
      %v308 = vsub.s32 0, %v307
      %v309 = vrot.slane %v299, %v308
      %v310 = vadd.f32 %v304, %v309
      %v311 = vadd.f32 %v305, %v309
      %v312 = vsel %vm68, %v310, 0.0
      %313 = vadd.xlane.f32.xlu0 %v312
      %v314 = vpop.xlane.xlu0 %313
      %v315 = vsel %vm68, %v311, 0.0
      %316 = vadd.xlane.f32.xlu0 %v315
      %v317 = vpop.xlane.xlu0 %316
      %v318 = vrcp.pop 32.0
      %v319 = vmul.f32 %v314, %v318
      %v320 = vmul.f32 %v317, %v318
      %v321 = vsub.f32 %v310, %v319
      %v322 = vsub.f32 %v311, %v320
      %v323 = vmul.f32 %v321, %v321
      %v324 = vmul.f32 %v322, %v322
      %v325 = vsel %vm68, %v323, 0.0
      %326 = vadd.xlane.f32.xlu0 %v325
      %v327 = vpop.xlane.xlu0 %326
      %v328 = vsel %vm68, %v324, 0.0
      %329 = vadd.xlane.f32.xlu0 %v328
      %v330 = vpop.xlane.xlu0 %329
      %v331 = vmul.f32 %v327, %v318
      %v332 = vmul.f32 %v330, %v318
      %v333 = vadd.f32 %v331, 1e-05
      %v334 = vadd.f32 %v332, 1e-05
      %v335 = vrsqrt.pop %v333
      %v336 = vrsqrt.pop %v334
      %v337 = vmul.f32 %v321, %v335
      %v338 = vmul.f32 %v322, %v336
      %v339 = vlaneseq
      %v340 = vshrl.u32 %v339, 7
      %v341 = vsub.s32 0, %v340
      %v342 = vrot.slane %v300, %v341
      %v343 = vmul.f32 %v337, %v342
      %v344 = vmul.f32 %v338, %v342
      %v345 = vlaneseq
      %v346 = vshrl.u32 %v345, 7
      %v347 = vsub.s32 0, %v346
      %v348 = vrot.slane %v301, %v347
      %v349 = vadd.f32 %v343, %v348
      %v350 = vadd.f32 %v344, %v348
      %351 = vst.msk [vmem:[#allocation3] sm:$0xff] %vm68, %v349
      %352 = vst.msk [vmem:[#allocation3 + $0x8] sm:$0xff] %vm68, %v350
    $region29: #{ffn_layer.1} parent=1 // pred_fallthru
      _
    // Predicated region
    $region30: #{ffn_layer.1} parent=1 // pred_check
      _
    $region31: #{ffn_layer.1} parent=1 // pred_check_branch
      %354 = sbr.rel (0) target = $region33
    $region32: #{ffn_layer.1} parent=1 // pred_region
      %s356 = ssub.s32 256, 256
      %357 = vsyncadd [#allocation4], %s356
      %s358 = sshll.u32 [#allocation3], 4
      %s359 = int_to_ptr.vmem [resolvable:$true] %s358
      %364 = dma.vmem_to_hbm [thread:$0]  %s359, 256, %s5, [#allocation4], 128, 128, 8
    $region33: #{ffn_layer.1} parent=1 // pred_fallthru
      _
    // Predicated region
    $region34: #{ffn_layer.1} parent=1 // pred_check
      _
    $region35: #{ffn_layer.1} parent=1 // pred_check_branch
      %366 = sbr.rel (0) target = $region37
    $region36: #{ffn_layer.1} parent=1 // pred_region
      %367 = dma.done [#allocation4], 256
    $region37: #{ffn_layer.1} parent=1 // pred_fallthru
      _
    %368 = vsyncpa [#allocation4], 1

</llo_original>
